<compile_context>
chip_gen: v5e
topology: v5e:2x2
jax: 0.10.0
libtpu: 0.0.40
codegen_flags: <defaults>
</compile_context>

<pallas_src>
import jax
import jax.numpy as jnp
from jax.experimental import pallas as pl
from jax.experimental.pallas import tpu as pltpu

LANES = 128
SUBLANES = 8
MAX_TILE_ROWS = 1024  # 1024 x 128 x 4B = 512 KiB per buffer per stream


def mlp_kernel(params_ref, x_ref, o_ref):
    # params_ref (SMEM, f32[13]): [w1_0..w1_3, b1_0..b1_3, w2_0..w2_3, b2]
    # x_ref / o_ref: (tile_rows, 128) f32 tiles with the batch flattened across
    # sublanes and lanes.  h_j = relu(x*w1_j + b1_j); y = sum_j h_j*w2_j + b2.
    x = x_ref[...]
    acc = None
    for j in range(4):  # statically unrolled: 4 hidden units
        h = jnp.maximum(x * params_ref[j] + params_ref[4 + j], 0.0)
        term = h * params_ref[8 + j]
        acc = term if acc is None else acc + term
    o_ref[...] = acc + params_ref[12]


def simple_net_forward(x, w1, b1, w2, b2):
    """x: (B, 1) f32. w1: (4, 1), b1: (4,), w2: (1, 4), b2: (1,) — PyTorch Linear layout."""
    B = x.shape[0]

    # Flatten the batch and pad it to whole (tile_rows, 128) tiles.
    rows = -(-B // LANES)                                   # ceil(B / 128)
    rows_p = max(SUBLANES, ((rows + SUBLANES - 1) // SUBLANES) * SUBLANES)
    tile_rows = min(rows_p, MAX_TILE_ROWS)
    rows_p = ((rows_p + tile_rows - 1) // tile_rows) * tile_rows
    num_tiles = rows_p // tile_rows

    xf = x.reshape(-1).astype(jnp.float32)
    xp = jnp.pad(xf, (0, rows_p * LANES - B)).reshape(rows_p, LANES)

    # Pack the 13 parameters for SMEM scalar prefetch.
    params = jnp.concatenate(
        [w1.reshape(-1), b1.reshape(-1), w2.reshape(-1), b2.reshape(-1)]
    ).astype(jnp.float32)

    out = pl.pallas_call(
        mlp_kernel,
        out_shape=jax.ShapeDtypeStruct((rows_p, LANES), jnp.float32),
        grid_spec=pltpu.PrefetchScalarGridSpec(
            num_scalar_prefetch=1,
            grid=(num_tiles,),
            in_specs=[pl.BlockSpec((tile_rows, LANES), lambda i, p: (i, 0))],
            out_specs=pl.BlockSpec((tile_rows, LANES), lambda i, p: (i, 0)),
        ),
        compiler_params=pltpu.CompilerParams(
            dimension_semantics=("parallel",)),
    )(params, xp)

    # Padded tail elements hold relu(b1)@w2 + b2 garbage; slice them away.
    return out.reshape(-1)[:B].reshape(B, 1)


if __name__ == "__main__":
    key = jax.random.PRNGKey(0)
    k_x, k_w1, k_b1, k_w2, k_b2 = jax.random.split(key, 5)

    # Deterministic synthetic parameters (shapes from SimpleNet.__init__).
    w1 = jax.random.normal(k_w1, (4, 1), jnp.float32) * 0.5   # nn.Linear(1, 4).weight
    b1 = jax.random.normal(k_b1, (4,), jnp.float32) * 0.1     # nn.Linear(1, 4).bias
    w2 = jax.random.normal(k_w2, (1, 4), jnp.float32) * 0.5   # nn.Linear(4, 1).weight
    b2 = jax.random.normal(k_b2, (1,), jnp.float32) * 0.1     # nn.Linear(4, 1).bias

    # Small input: batch=8, in_features=1 (matches Linear(1, 4)).
    x = jax.random.normal(k_x, (8, 1), jnp.float32)

    y = simple_net_forward(x, w1, b1, w2, b2)
    y = jax.block_until_ready(y)

    # Pure-JAX reference of the PyTorch forward pass.
    ref = jnp.maximum(x @ w1.T + b1, 0.0) @ w2.T + b2
    assert y.shape == (8, 1)
    assert jnp.allclose(y, ref, atol=1e-5, rtol=1e-5), (y, ref)

    print("KERNEL_OK")
</pallas_src>

<mosaic_0001>
module attributes {stable_mosaic.version = 11 : i64} {
  func.func @mlp_kernel(%arg0: i32, %arg1: memref<13xf32, #tpu.memory_space<smem>>, %arg2: memref<8x128xf32, #tpu.memory_space<vmem>>, %arg3: memref<8x128xf32, #tpu.memory_space<vmem>>) attributes {dimension_semantics = [#tpu.dimension_semantics<parallel>], iteration_bounds = array<i64: 1>, scalar_prefetch = 1 : i64, scratch_operands = 0 : i64, tpu.core_type = #tpu.core_type<tc>, window_params = [{transform_indices = @transform_0, window_bounds = array<i64: 8, 128>}, {transform_indices = @transform_1, window_bounds = array<i64: 8, 128>}]} {
    %c0 = arith.constant 0 : index
    %c0_0 = arith.constant 0 : index
    %0 = vector.load %arg2[%c0, %c0_0] : memref<8x128xf32, #tpu.memory_space<vmem>>, vector<8x128xf32>
    %c0_1 = arith.constant 0 : index
    %1 = memref.load %arg1[%c0_1] : memref<13xf32, #tpu.memory_space<smem>>
    %2 = vector.broadcast %1 : f32 to vector<8x128xf32>
    %3 = arith.mulf %0, %2 : vector<8x128xf32>
    %c4 = arith.constant 4 : index
    %4 = memref.load %arg1[%c4] : memref<13xf32, #tpu.memory_space<smem>>
    %5 = vector.broadcast %4 : f32 to vector<8x128xf32>
    %6 = arith.addf %3, %5 : vector<8x128xf32>
    %cst = arith.constant 0.000000e+00 : f32
    %7 = vector.broadcast %cst : f32 to vector<8x128xf32>
    %8 = arith.maximumf %6, %7 : vector<8x128xf32>
    %c8 = arith.constant 8 : index
    %9 = memref.load %arg1[%c8] : memref<13xf32, #tpu.memory_space<smem>>
    %10 = vector.broadcast %9 : f32 to vector<8x128xf32>
    %11 = arith.mulf %8, %10 : vector<8x128xf32>
    %c1 = arith.constant 1 : index
    %12 = memref.load %arg1[%c1] : memref<13xf32, #tpu.memory_space<smem>>
    %13 = vector.broadcast %12 : f32 to vector<8x128xf32>
    %14 = arith.mulf %0, %13 : vector<8x128xf32>
    %c5 = arith.constant 5 : index
    %15 = memref.load %arg1[%c5] : memref<13xf32, #tpu.memory_space<smem>>
    %16 = vector.broadcast %15 : f32 to vector<8x128xf32>
    %17 = arith.addf %14, %16 : vector<8x128xf32>
    %cst_2 = arith.constant 0.000000e+00 : f32
    %18 = vector.broadcast %cst_2 : f32 to vector<8x128xf32>
    %19 = arith.maximumf %17, %18 : vector<8x128xf32>
    %c9 = arith.constant 9 : index
    %20 = memref.load %arg1[%c9] : memref<13xf32, #tpu.memory_space<smem>>
    %21 = vector.broadcast %20 : f32 to vector<8x128xf32>
    %22 = arith.mulf %19, %21 : vector<8x128xf32>
    %23 = arith.addf %11, %22 : vector<8x128xf32>
    %c2 = arith.constant 2 : index
    %24 = memref.load %arg1[%c2] : memref<13xf32, #tpu.memory_space<smem>>
    %25 = vector.broadcast %24 : f32 to vector<8x128xf32>
    %26 = arith.mulf %0, %25 : vector<8x128xf32>
    %c6 = arith.constant 6 : index
    %27 = memref.load %arg1[%c6] : memref<13xf32, #tpu.memory_space<smem>>
    %28 = vector.broadcast %27 : f32 to vector<8x128xf32>
    %29 = arith.addf %26, %28 : vector<8x128xf32>
    %cst_3 = arith.constant 0.000000e+00 : f32
    %30 = vector.broadcast %cst_3 : f32 to vector<8x128xf32>
    %31 = arith.maximumf %29, %30 : vector<8x128xf32>
    %c10 = arith.constant 10 : index
    %32 = memref.load %arg1[%c10] : memref<13xf32, #tpu.memory_space<smem>>
    %33 = vector.broadcast %32 : f32 to vector<8x128xf32>
    %34 = arith.mulf %31, %33 : vector<8x128xf32>
    %35 = arith.addf %23, %34 : vector<8x128xf32>
    %c3 = arith.constant 3 : index
    %36 = memref.load %arg1[%c3] : memref<13xf32, #tpu.memory_space<smem>>
    %37 = vector.broadcast %36 : f32 to vector<8x128xf32>
    %38 = arith.mulf %0, %37 : vector<8x128xf32>
    %c7 = arith.constant 7 : index
    %39 = memref.load %arg1[%c7] : memref<13xf32, #tpu.memory_space<smem>>
    %40 = vector.broadcast %39 : f32 to vector<8x128xf32>
    %41 = arith.addf %38, %40 : vector<8x128xf32>
    %cst_4 = arith.constant 0.000000e+00 : f32
    %42 = vector.broadcast %cst_4 : f32 to vector<8x128xf32>
    %43 = arith.maximumf %41, %42 : vector<8x128xf32>
    %c11 = arith.constant 11 : index
    %44 = memref.load %arg1[%c11] : memref<13xf32, #tpu.memory_space<smem>>
    %45 = vector.broadcast %44 : f32 to vector<8x128xf32>
    %46 = arith.mulf %43, %45 : vector<8x128xf32>
    %47 = arith.addf %35, %46 : vector<8x128xf32>
    %c12 = arith.constant 12 : index
    %48 = memref.load %arg1[%c12] : memref<13xf32, #tpu.memory_space<smem>>
    %49 = vector.broadcast %48 : f32 to vector<8x128xf32>
    %50 = arith.addf %47, %49 : vector<8x128xf32>
    %c0_5 = arith.constant 0 : index
    %c0_6 = arith.constant 0 : index
    %51 = vector.load %arg3[%c0_5, %c0_6] : memref<8x128xf32, #tpu.memory_space<vmem>>, vector<8x128xf32>
    tpu.vector_store %arg3[%c0_5, %c0_6], %50 {strides = array<i32>} : memref<8x128xf32, #tpu.memory_space<vmem>>, vector<8x128xf32>,
    return
  }
  func.func @transform_0(%arg0: i32, %arg1: memref<13xf32, #tpu.memory_space<smem>>) -> (i32, i32) {
    %c0_i32 = arith.constant 0 : i32
    %c0_i32_0 = arith.constant 0 : i32
    return %arg0, %c0_i32 : i32, i32
  }
  func.func @transform_1(%arg0: i32, %arg1: memref<13xf32, #tpu.memory_space<smem>>) -> (i32, i32) {
    %c0_i32 = arith.constant 0 : i32
    %c0_i32_0 = arith.constant 0 : i32
    return %arg0, %c0_i32 : i32, i32
  }
}

</mosaic_0001>

<llo_original>
// kernel: tpu_custom_call.1
$region0: #{tpu_custom_call.1}
  #allocation0 [shape = 'u32[]', space=smem, size = 0x4, offset = 0x4, fixed_abs, tag = 'smem constant byte address 0x4 - core index']
  #allocation1 [shape = 'u32[72,128]{1,0:T(1,128)}', space=vmem, size = 0x9000, scoped, tag = 'internal scratch']
  #allocation2 [shape = 's32[1]{0}', space=sflag, size = 0x4, scoped, tag = 'scoped memory for tpu_custom_call.1']
  #allocation3 [shape = 'u8[512]{0}', space=smem, size = 0x200, scoped, tag = 'prefetched SMEM operand 0']
  %s0 = inlined_call_operand.hbm [shape: f32[13], index: 0, kind: input, shape index: {}]
  %s1 = inlined_call_operand.hbm [shape: f32[8,128], index: 1, kind: input, shape index: {}]
  %s2 = inlined_call_operand.hbm [shape: f32[8,128], index: 2, kind: output, shape index: {}]
  %s3 = sld [smem:[#allocation0]]
  $region18: #{tpu_custom_call.1} parent=0
    _
  %s5 = ssub.s32 1, %s3
  %s6 = scalar_select 0, %s5, %s3
  %s8 = sshll.u32 %s0, 4
  %s9 = int_to_ptr.hbm [resolvable:$true] %s8
  %11 = dma.hbm_to_smem %s9, 16, [#allocation3], [#allocation2]
  %13 = dma.done [#allocation2], 16
  %14 = sfence
  $region1: #{tpu_custom_call.1} parent=0
    #allocation4 [shape = 'u8[4096]{0}', space=vmem, size = 0x1000, scoped, tag = 'input window, operand 1, single buffered']
    #allocation5 [shape = 's32[1]{0}', space=sflag, size = 0x4, scoped, tag = 'scoped memory for tpu_custom_call.1']
    #allocation6 [shape = 's32[1]{0}', space=sflag, size = 0x4, scoped, tag = 'scoped memory for tpu_custom_call.1']
    #allocation7 [shape = 'u8[4096]{0}', space=vmem, size = 0x1000, scoped, tag = 'output window, operand 0, single buffered']
    %15 = vsyncpa [#allocation5], 0
    %16 = vsyncpa [#allocation6], 0
    // Predicated region
    $region2: #{tpu_custom_call.1} parent=1 // pred_check
      _
    $region3: #{tpu_custom_call.1} parent=1 // pred_check_branch
      %18 = sbr.rel (0) target = $region5
    $region4: #{tpu_custom_call.1} parent=1 // pred_region
      %20 = vsyncadd [#allocation5], 0
      %s22 = sshll.u32 %s1, 4
      %s23 = int_to_ptr.hbm [resolvable:$true] %s22
      %s24 = sshll.u32 [#allocation4], 4
      %s25 = int_to_ptr.vmem [resolvable:$true] %s24
      %27 = dma.hbm_to_vmem [thread:$0]  %s23, 128, %s25, [#allocation5]
    $region5: #{tpu_custom_call.1} parent=1 // pred_fallthru
      _
    // Predicated region
    $region6: #{tpu_custom_call.1} parent=1 // pred_check
      _
    $region7: #{tpu_custom_call.1} parent=1 // pred_check_branch
      %29 = sbr.rel (0) target = $region9
    $region8: #{tpu_custom_call.1} parent=1 // pred_region
      %31 = dma.done [#allocation5], 128
    $region9: #{tpu_custom_call.1} parent=1 // pred_fallthru
      _
    %v32 = vld [vmem:[#allocation4] sm:$0xff]
    %s33 = sld [smem:[#allocation3]]
    %v34 = vstv %s33
    %v35 = vmul.f32 %v32, %v34
    %s36 = sld [smem:[#allocation3 + $0x4]]
    %v37 = vstv %s36
    %v38 = vadd.f32 %v35, %v37
    %v39 = vmax.f32 %v38, 0.0
    %s40 = sld [smem:[#allocation3 + $0x8]]
    %v41 = vstv %s40
    %v42 = vmul.f32 %v39, %v41
    %s43 = sld [smem:[#allocation3 + $0x1]]
    %v44 = vstv %s43
    %v45 = vmul.f32 %v32, %v44
    %s46 = sld [smem:[#allocation3 + $0x5]]
    %v47 = vstv %s46
    %v48 = vadd.f32 %v45, %v47
    %v49 = vmax.f32 %v48, 0.0
    %s50 = sld [smem:[#allocation3 + $0x9]]
    %v51 = vstv %s50
    %v52 = vmul.f32 %v49, %v51
    %v53 = vadd.f32 %v42, %v52
    %s54 = sld [smem:[#allocation3 + $0x2]]
    %v55 = vstv %s54
    %v56 = vmul.f32 %v32, %v55
    %s57 = sld [smem:[#allocation3 + $0x6]]
    %v58 = vstv %s57
    %v59 = vadd.f32 %v56, %v58
    %v60 = vmax.f32 %v59, 0.0
    %s61 = sld [smem:[#allocation3 + $0xa]]
    %v62 = vstv %s61
    %v63 = vmul.f32 %v60, %v62
    %v64 = vadd.f32 %v53, %v63
    %s65 = sld [smem:[#allocation3 + $0x3]]
    %v66 = vstv %s65
    %v67 = vmul.f32 %v32, %v66
    %s68 = sld [smem:[#allocation3 + $0x7]]
    %v69 = vstv %s68
    %v70 = vadd.f32 %v67, %v69
    %v71 = vmax.f32 %v70, 0.0
    %s72 = sld [smem:[#allocation3 + $0xb]]
    %v73 = vstv %s72
    %v74 = vmul.f32 %v71, %v73
    %v75 = vadd.f32 %v64, %v74
    %s76 = sld [smem:[#allocation3 + $0xc]]
    %v77 = vstv %s76
    %v78 = vadd.f32 %v75, %v77
    %79 = vst [vmem:[#allocation7] sm:$0xff] %v78
    // Predicated region
    $region10: #{tpu_custom_call.1} parent=1 // pred_check
      _
    $region11: #{tpu_custom_call.1} parent=1 // pred_check_branch
      %81 = sbr.rel (0) target = $region13
    $region12: #{tpu_custom_call.1} parent=1 // pred_region
      %83 = vsyncadd [#allocation6], 0
      %s85 = sshll.u32 [#allocation7], 4
      %s86 = int_to_ptr.vmem [resolvable:$true] %s85
      %s87 = sshll.u32 %s2, 4
      %s88 = int_to_ptr.hbm [resolvable:$true] %s87
      %90 = dma.vmem_to_hbm [thread:$0]  %s86, 128, %s88, [#allocation6]
    $region13: #{tpu_custom_call.1} parent=1 // pred_fallthru
      _
    // Predicated region
    $region14: #{tpu_custom_call.1} parent=1 // pred_check
      _
    $region15: #{tpu_custom_call.1} parent=1 // pred_check_branch
      %92 = sbr.rel (0) target = $region17
    $region16: #{tpu_custom_call.1} parent=1 // pred_region
      %94 = dma.done [#allocation6], 128
    $region17: #{tpu_custom_call.1} parent=1 // pred_fallthru
      _
    %95 = vsyncpa [#allocation5], 1
    %96 = vsyncpa [#allocation6], 1

</llo_original>
